<compile_context>
chip_gen: v6e
topology: v6e:2x2x1
jax: 0.10.0
libtpu: 0.0.40
codegen_flags: <defaults>
</compile_context>

<pallas_src>
import functools
import math

import jax
import jax.numpy as jnp
from jax.experimental import pallas as pl
from jax.experimental.pallas import tpu as pltpu


def _interaction_kernel(qc_ref, kw_ref, bias_ref, v_ref, out_ref, *attn_refs,
                        cq, Lk, store_attn):
    """One (batch, row-tile) grid step.

    qc_ref   : (1, G, cq*dk)      query rows, cq consecutive rows grouped on lanes
    kw_ref   : (1, cq*dk, cq*Lk)  per-batch K-side folded bilinear weight
    bias_ref : (1, cq*Lk)         folded conv biases (f32), matmul-column order
    v_ref    : (1, Lk, dv)        values, original key order
    out_ref  : (1, G, cq*dv)      outputs in grouped (i, p) layout
    attn_refs: optional (1, G, cq*Lk) attention in grouped layout
    """
    qc = qc_ref[0]                  # (G, cq*dk)
    kw = kw_ref[0]                  # (cq*dk, cq*Lk)
    vv = v_ref[0]                   # (Lk, dv)
    cdt = qc.dtype

    # Single fused, lane-dense MXU matmul; columns are already ordered
    # (p, j*ck+q), i.e. the final layout -> no in-kernel un-interleave.
    mm = jnp.dot(qc, kw, preferred_element_type=jnp.float32)     # (G, cq*Lk) f32
    logits = mm + bias_ref[...]                                  # (1, cq*Lk) broadcast

    attn_segs = []
    out_segs = []
    for p in range(cq):                                          # tiny static loop
        s = logits[:, p * Lk:(p + 1) * Lk]                       # lane-aligned slice
        m = jnp.max(s, axis=-1, keepdims=True)
        # exp in the compute dtype: bf16 exp doubles EUP throughput on v6e/v7x
        # (on v5e, which has no bf16 EUP, this is still correct via f32).
        e = jnp.exp((s - m).astype(cdt))
        denom = jnp.sum(e.astype(jnp.float32), axis=-1, keepdims=True)
        # Exact reciprocal: approx=True caused the previous `out` mismatch.
        inv = (1.0 / denom).astype(cdt)
        a = e * inv                                              # softmax over Lk
        # TODO(synk): mask / st_weight / training-mode dropout branches not implemented.
        attn_segs.append(a)
        out_segs.append(jnp.dot(a, vv, preferred_element_type=jnp.float32))

    out_ref[0] = jnp.concatenate(out_segs, axis=-1).astype(out_ref.dtype)
    if store_attn:
        (attn_ref,) = attn_refs
        attn_ref[0] = jnp.concatenate(attn_segs, axis=-1).astype(attn_ref.dtype)


def _vmem_bytes_estimate(G, cq, dk, Lk, dv, cbytes, obytes, store_attn):
    tq = G * cq
    fixed = (2 * (cq * dk) * (cq * Lk) * cbytes   # KW (resident; count 2x to be safe)
             + 2 * Lk * dv * cbytes               # v block
             + 2 * cq * Lk * 4)                   # bias row (f32)
    per = (2 * G * (cq * dk) * cbytes             # q block (double-buffered)
           + 2 * tq * dv * obytes                 # out block
           + (2 * tq * Lk * obytes if store_attn else 0)   # attn block
           + 3 * tq * Lk * 4)                     # f32 logits / exp intermediates
    return fixed + per


def _pick_row_group(l1, cq, dk, Lk, dv, cbytes, obytes, store_attn, budget):
    # G must divide l1 and satisfy the (8,128) sublane constraint (G%8==0 or G==l1).
    cands = [g for g in range(l1, 0, -1)
             if l1 % g == 0 and (g == l1 or g % 8 == 0)]
    for g in cands:
        if _vmem_bytes_estimate(g, cq, dk, Lk, dv, cbytes, obytes, store_attn) <= budget:
            return g
    return cands[-1]


def interaction_forward(q, k, v, wd, bd, wu, bu, *, cq, ck, temperature,
                        compute_dtype=None, return_attn=True, row_tile=None):
    B, Lq, dk = q.shape
    Lk = k.shape[1]
    dv = v.shape[-1]
    assert Lq % cq == 0 and Lk % ck == 0
    l1, l2 = Lq // cq, Lk // ck

    f32 = jnp.float32
    cdt = jnp.dtype(compute_dtype) if compute_dtype is not None else jnp.dtype(q.dtype)
    out_dt = cdt
    cbytes = cdt.itemsize
    obytes = jnp.dtype(out_dt).itemsize

    # ---- Fold Conv2d + ConvTranspose2d + channel-sum + 0.5*global + 1/temperature
    #      into one bilinear weight (O(weights), done once, f32) ----
    wu_sum = wu.astype(f32).sum(axis=1)                               # (dk, cq, ck)
    bu_sum = bu.astype(f32).sum()
    # Weff[a,e,u,p,q] = sum_o Wd[o,u,a,e] * wu_sum[o,p,q]
    weff = jnp.einsum('ouae,opq->aeupq', wd.astype(f32), wu_sum)      # (cq,ck,dk,cq,ck)
    iden = jnp.einsum('ap,eq->aepq',
                      jnp.eye(cq, dtype=f32), jnp.eye(ck, dtype=f32))
    wtot = (0.5 * weff + 0.5 * iden[:, :, None, :, :]) / float(temperature)
    bias = (0.5 / float(temperature)) * (
        bu_sum + jnp.einsum('o,opq->pq', bd.astype(f32), wu_sum))     # (cq, ck)
    # Bias laid out to match the fused-matmul column order p*Lk + j*ck + q.
    bias_row = jnp.broadcast_to(bias[:, None, :], (cq, l2, ck)).reshape(1, cq * Lk)
    bias_row = bias_row.astype(f32)

    # ---- K-side precompute (per batch):
    #   KW[b, a*dk+u, p*Lk + j*ck+q] = sum_e Wtot[a,e,u,p,q] * k[b, j*ck+e, u]
    # Removes the dk-times-redundant block-diagonal matmul from every grid step.
    k_g = k.astype(f32).reshape(B, l2, ck, dk)                        # [b, j, e, u]
    kw = jnp.einsum('aeupq,bjeu->baupjq', wtot, k_g)
    kw = kw.reshape(B, cq * dk, cq * Lk).astype(cdt)

    q_cat = q.astype(cdt).reshape(B, l1, cq * dk)   # free reshape: rows grouped by cq
    v_c = v.astype(cdt)

    # ---- Row-tile selection from a VMEM budget (v7x: 64 MiB per core) ----
    try:
        cap = int(getattr(pltpu.get_tpu_info(), "vmem_capacity_bytes", 64 * 2**20))
    except Exception:               # not on TPU hardware / interpret mode
        cap = 64 * 2**20
    if row_tile is not None:
        assert row_tile % cq == 0
        G = row_tile // cq
        assert l1 % G == 0 and (G == l1 or G % 8 == 0)
    else:
        G = _pick_row_group(l1, cq, dk, Lk, dv, cbytes, obytes, return_attn,
                            budget=int(0.7 * cap))
    n_row_tiles = l1 // G
    est = _vmem_bytes_estimate(G, cq, dk, Lk, dv, cbytes, obytes, return_attn)
    vmem_limit = int(min(int(0.9 * cap), max(32 * 2**20, 2 * est)))

    kernel = functools.partial(_interaction_kernel, cq=cq, Lk=Lk,
                               store_attn=return_attn)

    if return_attn:
        out_shape = (jax.ShapeDtypeStruct((B, l1, cq * dv), out_dt),
                     jax.ShapeDtypeStruct((B, l1, cq * Lk), out_dt))
        out_specs = (pl.BlockSpec((1, G, cq * dv), lambda b, t: (b, t, 0)),
                     pl.BlockSpec((1, G, cq * Lk), lambda b, t: (b, t, 0)))
    else:
        out_shape = jax.ShapeDtypeStruct((B, l1, cq * dv), out_dt)
        out_specs = pl.BlockSpec((1, G, cq * dv), lambda b, t: (b, t, 0))

    result = pl.pallas_call(
        kernel,
        out_shape=out_shape,
        grid_spec=pltpu.PrefetchScalarGridSpec(
            num_scalar_prefetch=0,
            # B slowest so KW / V blocks stay resident across row tiles.
            grid=(B, n_row_tiles),
            in_specs=[
                pl.BlockSpec((1, G, cq * dk), lambda b, t: (b, t, 0)),
                pl.BlockSpec((1, cq * dk, cq * Lk), lambda b, t: (b, 0, 0)),
                pl.BlockSpec((1, cq * Lk), lambda b, t: (0, 0)),
                pl.BlockSpec((1, Lk, dv), lambda b, t: (b, 0, 0)),
            ],
            out_specs=out_specs,
        ),
        compiler_params=pltpu.CompilerParams(
            dimension_semantics=("parallel", "parallel"),   # both TCs busy on v7x
            vmem_limit_bytes=vmem_limit),
    )(q_cat, kw, bias_row, v_c)

    if return_attn:
        out_raw, attn_raw = result
        # Free (bitcast) reshapes back to the module's output layout.
        return out_raw.reshape(B, Lq, dv), attn_raw.reshape(B, Lq, Lk)
    return result.reshape(B, Lq, dv)


def interaction_reference(q, k, v, wd, bd, wu, bu, *, cq, ck, temperature):
    """Pure-JAX reference mirroring the PyTorch forward (use_conv=True, mask=None)."""
    B, Lq, dk = q.shape
    Lk = k.shape[1]
    l1, l2 = Lq // cq, Lk // ck
    g = jnp.einsum('byd,bxd->byx', q, k)
    itr = q[:, :, None, :] * k[:, None, :, :]                        # (B, Lq, Lk, dk)
    itr_r = itr.reshape(B, l1, cq, l2, ck, dk)
    d = jnp.einsum('bipjqc,ocpq->boij', itr_r, wd) + bd[None, :, None, None]
    u = jnp.einsum('bcij,copq->boipjq', d, wu)
    u = u.reshape(B, dk, Lq, Lk) + bu[None, :, None, None]
    local = u.sum(axis=1)
    attn = (0.5 * g + 0.5 * local) / temperature
    attn = jax.nn.softmax(attn, axis=-1)
    out = jnp.einsum('byx,bxd->byd', attn, v)
    return out, attn


if __name__ == "__main__":
    # Lq = Lk = 128 keeps the attn / score stores lane-dense (multiple of 128).
    B, Lq, Lk, dk, dv = 2, 128, 128, 32, 32
    cq, ck = 2, 2
    temperature = math.sqrt(dk)

    key = jax.random.PRNGKey(0)
    k1, k2, k3, k4, k5, k6, k7 = jax.random.split(key, 7)
    q = jax.random.normal(k1, (B, Lq, dk), jnp.float32)
    kk = jax.random.normal(k2, (B, Lk, dk), jnp.float32)
    v = jax.random.normal(k3, (B, Lk, dv), jnp.float32)

    # Parameters per Interaction.__init__:
    # downsample: Conv2d(dk, dk, (cq, ck))          -> weight (dk, dk, cq, ck), bias (dk,)
    # upsample:   ConvTranspose2d(dk, dk, (cq, ck)) -> weight (dk, dk, cq, ck), bias (dk,)
    fan = dk * cq * ck
    wd = jax.random.normal(k4, (dk, dk, cq, ck), jnp.float32) / math.sqrt(fan)
    bd = 0.02 * jax.random.normal(k5, (dk,), jnp.float32)
    wu = jax.random.normal(k6, (dk, dk, cq, ck), jnp.float32) / math.sqrt(fan)
    bu = 0.02 * jax.random.normal(k7, (dk,), jnp.float32)
    # NOTE: self.fc (Linear(cq*ck, 1)) / relu only matter on the use_conv=False path,
    # which this forward (use_conv=True default) never takes.

    out_ref, attn_ref = interaction_reference(q, kk, v, wd, bd, wu, bu,
                                              cq=cq, ck=ck, temperature=temperature)

    # 1) Default path: compute dtype follows the inputs (f32 here).
    out, attn = interaction_forward(q, kk, v, wd, bd, wu, bu,
                                    cq=cq, ck=ck, temperature=temperature)
    jax.block_until_ready((out, attn))
    assert out.shape == (B, Lq, dv) and attn.shape == (B, Lq, Lk)
    assert jnp.allclose(attn, attn_ref, atol=3e-2, rtol=3e-2), "attn mismatch (f32)"
    assert jnp.allclose(out, out_ref, atol=3e-2, rtol=3e-2), "output mismatch (f32)"

    # 2) out-only path: skips the (B, Lq, Lk) attention HBM writeback entirely.
    out_only = interaction_forward(q, kk, v, wd, bd, wu, bu,
                                   cq=cq, ck=ck, temperature=temperature,
                                   return_attn=False)
    jax.block_until_ready(out_only)
    assert jnp.allclose(out_only, out_ref, atol=3e-2, rtol=3e-2), \
        "output mismatch (out-only)"

    # 3) bf16 compute path (recommended production setting on v5e/v6e/v7x);
    #    loose tolerance reflects bf16 operand rounding, not algorithm error.
    out_bf, attn_bf = interaction_forward(q, kk, v, wd, bd, wu, bu,
                                          cq=cq, ck=ck, temperature=temperature,
                                          compute_dtype=jnp.bfloat16)
    jax.block_until_ready((out_bf, attn_bf))
    assert jnp.allclose(attn_bf.astype(jnp.float32), attn_ref,
                        atol=0.15, rtol=0.15), "attn mismatch (bf16)"
    assert jnp.allclose(out_bf.astype(jnp.float32), out_ref,
                        atol=0.15, rtol=0.15), "output mismatch (bf16)"

    print("KERNEL_OK")
</pallas_src>

<mosaic_0001>
module attributes {stable_mosaic.version = 11 : i64} {
  func.func @_interaction_kernel(%arg0: i32, %arg1: i32, %arg2: memref<1x64x64xf32, #tpu.memory_space<vmem>>, %arg3: memref<1x64x256xf32, #tpu.memory_space<vmem>>, %arg4: memref<1x256xf32, #tpu.memory_space<vmem>>, %arg5: memref<1x128x32xf32, #tpu.memory_space<vmem>>, %arg6: memref<1x64x64xf32, #tpu.memory_space<vmem>>, %arg7: memref<1x64x256xf32, #tpu.memory_space<vmem>>) attributes {dimension_semantics = [#tpu.dimension_semantics<parallel>, #tpu.dimension_semantics<parallel>], iteration_bounds = array<i64: 2, 1>, scalar_prefetch = 0 : i64, scratch_operands = 0 : i64, tpu.core_type = #tpu.core_type<tc>, window_params = [{transform_indices = @transform_0, window_bounds = array<i64: 1, 64, 64>}, {transform_indices = @transform_1, window_bounds = array<i64: 1, 64, 256>}, {pipeline_mode = #tpu.pipeline_mode<synchronous>, transform_indices = @transform_2, window_bounds = array<i64: 1, 256>}, {transform_indices = @transform_3, window_bounds = array<i64: 1, 128, 32>}, {transform_indices = @transform_4, window_bounds = array<i64: 1, 64, 64>}, {transform_indices = @transform_5, window_bounds = array<i64: 1, 64, 256>}]} {
    %c0 = arith.constant 0 : index
    %c0_0 = arith.constant 0 : index
    %c0_1 = arith.constant 0 : index
    %0 = vector.load %arg2[%c0, %c0_0, %c0_1] : memref<1x64x64xf32, #tpu.memory_space<vmem>>, vector<1x64x64xf32>
    %1 = vector.shape_cast %0 : vector<1x64x64xf32> to vector<64x64xf32>
    %c0_2 = arith.constant 0 : index
    %c0_3 = arith.constant 0 : index
    %c0_4 = arith.constant 0 : index
    %2 = vector.load %arg3[%c0_2, %c0_3, %c0_4] : memref<1x64x256xf32, #tpu.memory_space<vmem>>, vector<1x64x256xf32>
    %3 = vector.shape_cast %2 : vector<1x64x256xf32> to vector<64x256xf32>
    %c0_5 = arith.constant 0 : index
    %c0_6 = arith.constant 0 : index
    %c0_7 = arith.constant 0 : index
    %4 = vector.load %arg5[%c0_5, %c0_6, %c0_7] : memref<1x128x32xf32, #tpu.memory_space<vmem>>, vector<1x128x32xf32>
    %5 = vector.shape_cast %4 : vector<1x128x32xf32> to vector<128x32xf32>
    %cst = arith.constant dense<0.000000e+00> : vector<64x256xf32>
    %6 = tpu.matmul %1, %3, %cst {dimension_numbers = #tpu.dot_dimension_numbers<[1], [0], [0], [1], [0, 0, 1, 1], [], []>} : vector<64x64xf32>, vector<64x256xf32>, vector<64x256xf32> -> vector<64x256xf32>
    %c0_8 = arith.constant 0 : index
    %c0_9 = arith.constant 0 : index
    %7 = vector.load %arg4[%c0_8, %c0_9] : memref<1x256xf32, #tpu.memory_space<vmem>>, vector<1x256xf32>
    %8 = vector.broadcast %7 : vector<1x256xf32> to vector<64x256xf32>
    %9 = arith.addf %6, %8 : vector<64x256xf32>
    %10 = vector.extract_strided_slice %9 {offsets = [0, 0], sizes = [64, 128], strides = [1, 1]} : vector<64x256xf32> to vector<64x128xf32>
    %cst_10 = arith.constant dense<0xFF800000> : vector<64xf32>
    %11 = vector.multi_reduction <maximumf>, %10, %cst_10 [1] : vector<64x128xf32> to vector<64xf32>
    %12 = vector.shape_cast %11 : vector<64xf32> to vector<64x1xf32>
    %13 = vector.broadcast %12 : vector<64x1xf32> to vector<64x128xf32>
    %14 = arith.subf %10, %13 : vector<64x128xf32>
    %15 = math.exp %14 : vector<64x128xf32>
    %cst_11 = arith.constant dense<0.000000e+00> : vector<64xf32>
    %16 = vector.multi_reduction <add>, %15, %cst_11 [1] : vector<64x128xf32> to vector<64xf32>
    %17 = vector.shape_cast %16 : vector<64xf32> to vector<64x1xf32>
    %cst_12 = arith.constant 1.000000e+00 : f32
    %18 = vector.broadcast %cst_12 : f32 to vector<64x1xf32>
    %19 = arith.divf %18, %17 : vector<64x1xf32>
    %20 = vector.broadcast %19 : vector<64x1xf32> to vector<64x128xf32>
    %21 = arith.mulf %15, %20 : vector<64x128xf32>
    %cst_13 = arith.constant dense<0.000000e+00> : vector<64x32xf32>
    %22 = tpu.matmul %21, %5, %cst_13 {dimension_numbers = #tpu.dot_dimension_numbers<[1], [0], [0], [1], [0, 0, 1, 1], [], []>} : vector<64x128xf32>, vector<128x32xf32>, vector<64x32xf32> -> vector<64x32xf32>
    %23 = vector.extract_strided_slice %9 {offsets = [0, 128], sizes = [64, 128], strides = [1, 1]} : vector<64x256xf32> to vector<64x128xf32>
    %cst_14 = arith.constant dense<0xFF800000> : vector<64xf32>
    %24 = vector.multi_reduction <maximumf>, %23, %cst_14 [1] : vector<64x128xf32> to vector<64xf32>
    %25 = vector.shape_cast %24 : vector<64xf32> to vector<64x1xf32>
    %26 = vector.broadcast %25 : vector<64x1xf32> to vector<64x128xf32>
    %27 = arith.subf %23, %26 : vector<64x128xf32>
    %28 = math.exp %27 : vector<64x128xf32>
    %cst_15 = arith.constant dense<0.000000e+00> : vector<64xf32>
    %29 = vector.multi_reduction <add>, %28, %cst_15 [1] : vector<64x128xf32> to vector<64xf32>
    %30 = vector.shape_cast %29 : vector<64xf32> to vector<64x1xf32>
    %cst_16 = arith.constant 1.000000e+00 : f32
    %31 = vector.broadcast %cst_16 : f32 to vector<64x1xf32>
    %32 = arith.divf %31, %30 : vector<64x1xf32>
    %33 = vector.broadcast %32 : vector<64x1xf32> to vector<64x128xf32>
    %34 = arith.mulf %28, %33 : vector<64x128xf32>
    %cst_17 = arith.constant dense<0.000000e+00> : vector<64x32xf32>
    %35 = tpu.matmul %34, %5, %cst_17 {dimension_numbers = #tpu.dot_dimension_numbers<[1], [0], [0], [1], [0, 0, 1, 1], [], []>} : vector<64x128xf32>, vector<128x32xf32>, vector<64x32xf32> -> vector<64x32xf32>
    %36 = tpu.concatenate %22, %35 in 1 : vector<64x32xf32>, vector<64x32xf32> -> vector<64x64xf32>
    %c0_18 = arith.constant 0 : index
    %c0_19 = arith.constant 0 : index
    %c0_20 = arith.constant 0 : index
    %37 = vector.load %arg6[%c0_18, %c0_19, %c0_20] : memref<1x64x64xf32, #tpu.memory_space<vmem>>, vector<1x64x64xf32>
    %38 = vector.shape_cast %37 : vector<1x64x64xf32> to vector<64x64xf32>
    %39 = vector.shape_cast %36 : vector<64x64xf32> to vector<1x64x64xf32>
    tpu.vector_store %arg6[%c0_18, %c0_19, %c0_20], %39 {strides = array<i32>} : memref<1x64x64xf32, #tpu.memory_space<vmem>>, vector<1x64x64xf32>,
    %40 = tpu.concatenate %21, %34 in 1 : vector<64x128xf32>, vector<64x128xf32> -> vector<64x256xf32>
    %c0_21 = arith.constant 0 : index
    %c0_22 = arith.constant 0 : index
    %c0_23 = arith.constant 0 : index
    %41 = vector.load %arg7[%c0_21, %c0_22, %c0_23] : memref<1x64x256xf32, #tpu.memory_space<vmem>>, vector<1x64x256xf32>
    %42 = vector.shape_cast %41 : vector<1x64x256xf32> to vector<64x256xf32>
    %43 = vector.shape_cast %40 : vector<64x256xf32> to vector<1x64x256xf32>
    tpu.vector_store %arg7[%c0_21, %c0_22, %c0_23], %43 {strides = array<i32>} : memref<1x64x256xf32, #tpu.memory_space<vmem>>, vector<1x64x256xf32>,
    return
  }
  func.func @transform_0(%arg0: i32, %arg1: i32) -> (i32, i32, i32) {
    %c0_i32 = arith.constant 0 : i32
    %c0_i32_0 = arith.constant 0 : i32
    return %arg0, %arg1, %c0_i32 : i32, i32, i32
  }
  func.func @transform_1(%arg0: i32, %arg1: i32) -> (i32, i32, i32) {
    %c0_i32 = arith.constant 0 : i32
    %c0_i32_0 = arith.constant 0 : i32
    %c0_i32_1 = arith.constant 0 : i32
    return %arg0, %c0_i32, %c0_i32_0 : i32, i32, i32
  }
  func.func @transform_2(%arg0: i32, %arg1: i32) -> (i32, i32) {
    %c0_i32 = arith.constant 0 : i32
    %c0_i32_0 = arith.constant 0 : i32
    %c0_i32_1 = arith.constant 0 : i32
    return %c0_i32, %c0_i32_0 : i32, i32
  }
  func.func @transform_3(%arg0: i32, %arg1: i32) -> (i32, i32, i32) {
    %c0_i32 = arith.constant 0 : i32
    %c0_i32_0 = arith.constant 0 : i32
    %c0_i32_1 = arith.constant 0 : i32
    return %arg0, %c0_i32, %c0_i32_0 : i32, i32, i32
  }
  func.func @transform_4(%arg0: i32, %arg1: i32) -> (i32, i32, i32) {
    %c0_i32 = arith.constant 0 : i32
    %c0_i32_0 = arith.constant 0 : i32
    return %arg0, %arg1, %c0_i32 : i32, i32, i32
  }
  func.func @transform_5(%arg0: i32, %arg1: i32) -> (i32, i32, i32) {
    %c0_i32 = arith.constant 0 : i32
    %c0_i32_0 = arith.constant 0 : i32
    return %arg0, %arg1, %c0_i32 : i32, i32, i32
  }
}

</mosaic_0001>

<llo_original>
// kernel: tpu_custom_call.1
$region0: #{tpu_custom_call.1}
  #allocation0 [shape = 'u32[]', space=smem, size = 0x4, offset = 0x4, fixed_abs, tag = 'smem constant byte address 0x4 - core index']
  #allocation1 [shape = 'u32[144,128]{1,0:T(1,128)}', space=vmem, size = 0x12000, scoped, tag = 'internal scratch']
  %s0 = inlined_call_operand.hbm [shape: f32[2,64,64], index: 0, kind: input, shape index: {}]
  %s1 = inlined_call_operand.vmem [shape: f32[2,64,256], index: 1, kind: input, shape index: {}]
  %s2 = inlined_call_operand.vmem [shape: f32[1,256], index: 2, kind: input, shape index: {}]
  %s3 = inlined_call_operand.vmem [shape: f32[2,128,32], index: 3, kind: input, shape index: {}]
  %s4 = inlined_call_operand.hbm [shape: f32[2,64,64], index: 4, kind: output, shape index: {0}]
  %s5 = inlined_call_operand.hbm [shape: f32[2,64,256], index: 5, kind: output, shape index: {1}]
  %6 = xla_tuple %s4, %s5
  %s7 = sld [smem:[#allocation0]]
  $region61: #{tpu_custom_call.1} parent=0
    _
  %s9 = ssub.s32 1, %s7
  %s10 = scalar_select 0, %s9, %s7
  $region1: #{tpu_custom_call.1} parent=0
    #allocation2 [shape = 'u8[65536]{0}', space=vmem, size = 0x10000, scoped, tag = 'input window, operand 0']
    #allocation3 [shape = 's32[2]{0}', space=sflag, size = 0x8, scoped, tag = 'scoped memory for tpu_custom_call.1']
    #allocation4 [shape = 's32[2]{0}', space=sflag, size = 0x8, scoped, tag = 'scoped memory for tpu_custom_call.1']
    #allocation5 [shape = 'u8[65536]{0}', space=vmem, size = 0x10000, scoped, tag = 'output window, operand 0']
    #allocation6 [shape = 'u8[131072]{0}', space=vmem, size = 0x20000, scoped, tag = 'output window, operand 1']
    #allocation7 [shape = 's32[2]{0}', space=sflag, size = 0x8, scoped, tag = 'scoped memory for tpu_custom_call.1']
    %11 = vsyncpa [#allocation3], 0
    %s12 = scalar_lea.sflag [#allocation3], 1
    %13 = vsyncpa %s12, 0
    %14 = vsyncpa [#allocation4], 0
    %s15 = scalar_lea.sflag [#allocation4], 1
    %16 = vsyncpa %s15, 0
    %17 = vsyncpa [#allocation7], 0
    %s18 = scalar_lea.sflag [#allocation7], 1
    %19 = vsyncpa %s18, 0
    loop: start=0, step=1, limit=4
    $region2: #{tpu_custom_call.1} parent=1 // loop_pre_header
      _
    $region3: #{tpu_custom_call.1} parent=1 // loop_header
      %s21 = sphi 0, %s25
      %p22 = scmp.ge.s32.totalorder %s21, 4
      %s28 = sphi 0, %s40
      %s29 = sphi 0, %s36
      %s30 = sphi 0, %s28
      %s31 = sphi 0, %s29
      %s32 = sphi 0, %s30
      %s33 = sphi 0, %s31
      %s45 = sphi 0, %s47
      %s48 = sphi 0, %s45
      %s49 = sphi 0, %s48
      %s65 = sphi 0, %s49
      %s71 = sphi 0, %s73
      %s74 = sphi 0, %s71
      %s75 = sphi 0, %s74
      %s91 = sphi 0, %s75
      %s95 = sphi 0, %s95
      %s97 = sphi 0, %s95
      %s98 = sphi 0, %s97
      %s112 = sphi 0, %s98
      %s118 = sphi 0, %s120
      %s121 = sphi 0, %s118
      %s122 = sphi 0, %s121
      %s138 = sphi 0, %s122
      %s146 = sphi 0, %s148
      %s149 = sphi 0, %s146
      %s150 = sphi 0, %s149
      %s166 = sphi 0, %s150
      %s174 = sphi 0, %s176
      %s177 = sphi 0, %s174
      %s178 = sphi 0, %s177
      %s194 = sphi 0, %s178
    $region4: #{tpu_custom_call.1} parent=1 // loop_header_branch
      %24 = sbr.rel (%p22) target = $region8
    $region5: #{tpu_custom_call.1} parent=1 // loop_body
      %s26 = ssub.s32 %s21, 1
      %s27 = ssub.s32 %s21, 2
      %s34 = sadd.s32 1, %s29
      %p35 = scmp.ge.s32.totalorder %s34, 1
      %s36 = scalar_select %p35, 0, %s34
      %s37 = sadd.s32 1, %s28
      %s38 = scalar_select %p35, %s37, %s28
      %p39 = scmp.ge.s32.totalorder %s38, 2
      %s40 = scalar_select %p39, 0, %s38
      %s41 = ssub.s32 %s28, %s40
      %s42 = ssub.s32 %s29, %s36
      %s43 = sor.u32 %s41, %s42
      %p44 = scmp.eq.s32.totalorder %s43, 0
      %s46 = sadd.s32 %s45, 1
      %s47 = scalar_select %p44, %s45, %s46
      %p50 = pneg %p44
      %p51 = scmp.eq.s32.totalorder %s21, 1
      %p52 = por %p50, %p51
      %p53 = scmp.ne.s32.totalorder %s45, %s48
      %p54 = scmp.eq.s32.totalorder %s21, 0
      %p55 = por %p53, %p54
      %p56 = scmp.ne.s32.totalorder %s45, %s48
      %p57 = scmp.eq.s32.totalorder %s26, 1
      %p58 = por %p56, %p57
      %p59 = scmp.ne.s32.totalorder %s48, %s49
      %p60 = scmp.eq.s32.totalorder %s26, 0
      %p61 = por %p59, %p60
      %p62 = scmp.ne.s32.totalorder %s48, %s49
      %p63 = scmp.eq.s32.totalorder %s27, 1
      %p64 = por %p62, %p63
      %p66 = scmp.ne.s32.totalorder %s49, %s65
      %p67 = scmp.eq.s32.totalorder %s27, 0
      %p68 = por %p66, %p67
      %s69 = ssub.s32 %s28, %s40
      %p70 = scmp.eq.s32.totalorder %s69, 0
      %s72 = sadd.s32 %s71, 1
      %s73 = scalar_select %p70, %s71, %s72
      %p76 = pneg %p70
      %p77 = scmp.eq.s32.totalorder %s21, 1
      %p78 = por %p76, %p77
      %p79 = scmp.ne.s32.totalorder %s71, %s74
      %p80 = scmp.eq.s32.totalorder %s21, 0
      %p81 = por %p79, %p80
      %p82 = scmp.ne.s32.totalorder %s71, %s74
      %p83 = scmp.eq.s32.totalorder %s26, 1
      %p84 = por %p82, %p83
      %p85 = scmp.ne.s32.totalorder %s74, %s75
      %p86 = scmp.eq.s32.totalorder %s26, 0
      %p87 = por %p85, %p86
      %p88 = scmp.ne.s32.totalorder %s74, %s75
      %p89 = scmp.eq.s32.totalorder %s27, 1
      %p90 = por %p88, %p89
      %p92 = scmp.ne.s32.totalorder %s75, %s91
      %p93 = scmp.eq.s32.totalorder %s27, 0
      %p94 = por %p92, %p93
      %s96 = sadd.s32 %s95, 1
      %p99 = scmp.eq.s32.totalorder %s21, 1
      %p100 = scmp.ne.s32.totalorder %s95, %s97
      %p101 = scmp.eq.s32.totalorder %s21, 0
      %p102 = por %p100, %p101
      %p103 = scmp.ne.s32.totalorder %s95, %s97
      %p104 = scmp.eq.s32.totalorder %s26, 1
      %p105 = por %p103, %p104
      %p106 = scmp.ne.s32.totalorder %s97, %s98
      %p107 = scmp.eq.s32.totalorder %s26, 0
      %p108 = por %p106, %p107
      %p109 = scmp.ne.s32.totalorder %s97, %s98
      %p110 = scmp.eq.s32.totalorder %s27, 1
      %p111 = por %p109, %p110
      %p113 = scmp.ne.s32.totalorder %s98, %s112
      %p114 = scmp.eq.s32.totalorder %s27, 0
      %p115 = por %p113, %p114
      %s116 = ssub.s32 %s28, %s40
      %p117 = scmp.eq.s32.totalorder %s116, 0
      %s119 = sadd.s32 %s118, 1
      %s120 = scalar_select %p117, %s118, %s119
      %p123 = pneg %p117
      %p124 = scmp.eq.s32.totalorder %s21, 1
      %p125 = por %p123, %p124
      %p126 = scmp.ne.s32.totalorder %s118, %s121
      %p127 = scmp.eq.s32.totalorder %s21, 0
      %p128 = por %p126, %p127
      %p129 = scmp.ne.s32.totalorder %s118, %s121
      %p130 = scmp.eq.s32.totalorder %s26, 1
      %p131 = por %p129, %p130
      %p132 = scmp.ne.s32.totalorder %s121, %s122
      %p133 = scmp.eq.s32.totalorder %s26, 0
      %p134 = por %p132, %p133
      %p135 = scmp.ne.s32.totalorder %s121, %s122
      %p136 = scmp.eq.s32.totalorder %s27, 1
      %p137 = por %p135, %p136
      %p139 = scmp.ne.s32.totalorder %s122, %s138
      %p140 = scmp.eq.s32.totalorder %s27, 0
      %p141 = por %p139, %p140
      %s142 = ssub.s32 %s28, %s40
      %s143 = ssub.s32 %s29, %s36
      %s144 = sor.u32 %s142, %s143
      %p145 = scmp.eq.s32.totalorder %s144, 0
      %s147 = sadd.s32 %s146, 1
      %s148 = scalar_select %p145, %s146, %s147
      %p151 = pneg %p145
      %p152 = scmp.eq.s32.totalorder %s21, 1
      %p153 = por %p151, %p152
      %p154 = scmp.ne.s32.totalorder %s146, %s149
      %p155 = scmp.eq.s32.totalorder %s21, 0
      %p156 = por %p154, %p155
      %p157 = scmp.ne.s32.totalorder %s146, %s149
      %p158 = scmp.eq.s32.totalorder %s26, 1
      %p159 = por %p157, %p158
      %p160 = scmp.ne.s32.totalorder %s149, %s150
      %p161 = scmp.eq.s32.totalorder %s26, 0
      %p162 = por %p160, %p161
      %p163 = scmp.ne.s32.totalorder %s149, %s150
      %p164 = scmp.eq.s32.totalorder %s27, 1
      %p165 = por %p163, %p164
      %p167 = scmp.ne.s32.totalorder %s150, %s166
      %p168 = scmp.eq.s32.totalorder %s27, 0
      %p169 = por %p167, %p168
      %s170 = ssub.s32 %s28, %s40
      %s171 = ssub.s32 %s29, %s36
      %s172 = sor.u32 %s170, %s171
      %p173 = scmp.eq.s32.totalorder %s172, 0
      %s175 = sadd.s32 %s174, 1
      %s176 = scalar_select %p173, %s174, %s175
      %p179 = pneg %p173
      %p180 = scmp.eq.s32.totalorder %s21, 1
      %p181 = por %p179, %p180
      %p182 = scmp.ne.s32.totalorder %s174, %s177
      %p183 = scmp.eq.s32.totalorder %s21, 0
      %p184 = por %p182, %p183
      %p185 = scmp.ne.s32.totalorder %s174, %s177
      %p186 = scmp.eq.s32.totalorder %s26, 1
      %p187 = por %p185, %p186
      %p188 = scmp.ne.s32.totalorder %s177, %s178
      %p189 = scmp.eq.s32.totalorder %s26, 0
      %p190 = por %p188, %p189
      %p191 = scmp.ne.s32.totalorder %s177, %s178
      %p192 = scmp.eq.s32.totalorder %s27, 1
      %p193 = por %p191, %p192
      %p195 = scmp.ne.s32.totalorder %s178, %s194
      %p196 = scmp.eq.s32.totalorder %s27, 0
      %p197 = por %p195, %p196
      %p198 = scmp.le.s32.totalorder 1, %s21
      %p199 = scmp.lt.s32.totalorder %s21, 3
      %p200 = pnand %p198, %p199
      %p201 = pneg %p200
      // Predicated region
      $region9: #{tpu_custom_call.1} parent=5 // pred_check
        _
      $region10: #{tpu_custom_call.1} parent=5 // pred_check_branch
        %203 = sbr.rel (%p200) target = $region12
      $region11: #{tpu_custom_call.1} parent=5 // pred_region
        %s204 = ssub.s32 %s21, 1
        // Predicated region
        $region13: #{tpu_custom_call.1} parent=11 // pred_check
          %p205 = pneg %p108
        $region14: #{tpu_custom_call.1} parent=11 // pred_check_branch
          %207 = sbr.rel (%p205) target = $region16
        $region15: #{tpu_custom_call.1} parent=11 // pred_region
          _
        $region16: #{tpu_custom_call.1} parent=11 // pred_fallthru
          _
      $region12: #{tpu_custom_call.1} parent=5 // pred_fallthru
        _
      %p208 = scmp.lt.s32.totalorder %s21, 2
      // Predicated region
      $region17: #{tpu_custom_call.1} parent=5 // pred_check
        %p209 = pneg %p208
      $region18: #{tpu_custom_call.1} parent=5 // pred_check_branch
        %211 = sbr.rel (%p209) target = $region20
      $region19: #{tpu_custom_call.1} parent=5 // pred_region
        // Predicated region
        $region21: #{tpu_custom_call.1} parent=19 // pred_check
          %p212 = pneg %p55
        $region22: #{tpu_custom_call.1} parent=19 // pred_check_branch
          %214 = sbr.rel (%p212) target = $region24
        $region23: #{tpu_custom_call.1} parent=19 // pred_region
          %s215 = sand.u32 %s45, 1
          %s216 = scalar_lea.sflag [#allocation3], %s215
          %s217 = sand.u32 %s45, 1
          %s218 = smul.addr %s217, 64
          %s219 = scalar_lea.vmem [#allocation2], %s218
          %s220 = smul.u32 8, %s29
          %s222 = ssub.s32 1024, 1024
          %223 = vsyncadd %s216, %s222
          %s224 = smul.addr %s28, 8
          %s225 = sadd.s32 %s220, %s224
          %s226 = smul.addr %s225, 128
          %s227 = scalar_lea.hbm %s0, %s226
          %s228 = sshll.u32 %s219, 4
          %s229 = int_to_ptr.vmem [resolvable:$true] %s228
          %234 = dma.hbm_to_vmem [thread:$0]  %s227, 1024, %s229, %s216, 128, 128, 8
        $region24: #{tpu_custom_call.1} parent=19 // pred_fallthru
          _
        // Predicated region
        $region25: #{tpu_custom_call.1} parent=19 // pred_check
          %p235 = pneg %p81
        $region26: #{tpu_custom_call.1} parent=19 // pred_check_branch
          %237 = sbr.rel (%p235) target = $region28
        $region27: #{tpu_custom_call.1} parent=19 // pred_region
          %p238 = scmp.lt.s32.totalorder %s28, 1
          %s239 = scalar_select %p238, %s28, 1
          %s240 = smul.addr %s239, 16
          %s241 = smul.addr %s240, 8
          %s242 = scalar_lea.vmem %s1, %s241
        $region28: #{tpu_custom_call.1} parent=19 // pred_fallthru
          _
        // Predicated region
        $region29: #{tpu_custom_call.1} parent=19 // pred_check
          %p243 = pneg %p128
        $region30: #{tpu_custom_call.1} parent=19 // pred_check_branch
          %245 = sbr.rel (%p243) target = $region32
        $region31: #{tpu_custom_call.1} parent=19 // pred_region
          %p246 = scmp.lt.s32.totalorder %s28, 1
          %s247 = scalar_select %p246, %s28, 1
          %s248 = smul.addr %s247, 16
          %s249 = smul.addr %s248, 8
          %s250 = scalar_lea.vmem %s3, %s249
        $region32: #{tpu_custom_call.1} parent=19 // pred_fallthru
          _
      $region20: #{tpu_custom_call.1} parent=5 // pred_fallthru
        _
      %p251 = scmp.le.s32.totalorder 1, %s21
      %p252 = scmp.lt.s32.totalorder %s21, 3
      %p253 = pnand %p251, %p252
      %p254 = pneg %p253
      // Predicated region
      $region33: #{tpu_custom_call.1} parent=5 // pred_check
        _
      $region34: #{tpu_custom_call.1} parent=5 // pred_check_branch
        %256 = sbr.rel (%p253) target = $region36
      $region35: #{tpu_custom_call.1} parent=5 // pred_region
        %s257 = ssub.s32 %s21, 1
        %s258 = sand.u32 %s48, 1
        %s259 = scalar_lea.sflag [#allocation3], %s258
        %s260 = sand.u32 %s48, 1
        %s261 = smul.addr %s260, 64
        %s262 = scalar_lea.vmem [#allocation2], %s261
        // Predicated region
        $region37: #{tpu_custom_call.1} parent=35 // pred_check
          %p263 = pneg %p61
        $region38: #{tpu_custom_call.1} parent=35 // pred_check_branch
          %265 = sbr.rel (%p263) target = $region40
        $region39: #{tpu_custom_call.1} parent=35 // pred_region
          %266 = dma.done %s259, 1024
        $region40: #{tpu_custom_call.1} parent=35 // pred_fallthru
          _
        %s267 = sand.u32 %s48, 1
        %s268 = scalar_lea.sflag [#allocation3], %s267
        %s269 = sand.u32 %s48, 1
        %s270 = smul.addr %s269, 64
        %s271 = scalar_lea.vmem [#allocation2], %s270
        %p272 = pneg %p61
        %p273 = pneg %p58
        %p274 = scmp.lt.s32.totalorder %s30, 1
        %s275 = scalar_select %p274, %s30, 1
        %s276 = smul.addr %s275, 16
        %s277 = smul.addr %s276, 8
        %s278 = scalar_lea.vmem %s1, %s277
        %p279 = pneg %p87
        %p280 = pneg %p84
        %p281 = pneg %p108
        %p282 = pneg %p105
        %p283 = scmp.lt.s32.totalorder %s30, 1
        %s284 = scalar_select %p283, %s30, 1
        %s285 = smul.addr %s284, 16
        %s286 = smul.addr %s285, 8
        %s287 = scalar_lea.vmem %s3, %s286
        %p288 = pneg %p134
        %p289 = pneg %p131
        %p290 = pneg %p162
        %p291 = pneg %p159
        %s292 = sand.u32 %s149, 1
        %s293 = scalar_lea.sflag [#allocation4], %s292
        %s294 = sand.u32 %s149, 1
        %s295 = smul.addr %s294, 64
        %s296 = scalar_lea.vmem [#allocation5], %s295
        %p297 = pneg %p190
        %p298 = pneg %p187
        %s299 = sand.u32 %s177, 1
        %s300 = scalar_lea.sflag [#allocation7], %s299
        %s301 = sand.u32 %s177, 1
        %s302 = smul.addr %s301, 128
        %s303 = scalar_lea.vmem [#allocation6], %s302
        %s304 = smul.u32 8, %s31
        %p305 = scmp.lt.s32.totalorder %s30, 1
        %s306 = scalar_select %p305, %s30, 1
        %s307 = smul.addr %s306, 16
        %s308 = smul.addr %s307, 8
        %s309 = scalar_lea.vmem %s1, %s308
        %p310 = scmp.lt.s32.totalorder %s30, 1
        %s311 = scalar_select %p310, %s30, 1
        %s312 = smul.addr %s311, 16
        %s313 = smul.addr %s312, 8
        %s314 = scalar_lea.vmem %s3, %s313
        %s315 = smul.u32 8, %s31
        %s316 = smul.u32 8, %s31
        %v317 = vld [vmem:[%s262] sm:$0xff]
        %v318 = vld [vmem:[%s262 + $0x8] sm:$0xff]
        %v319 = vld [vmem:[%s262 + $0x10] sm:$0xff]
        %v320 = vld [vmem:[%s262 + $0x18] sm:$0xff]
        %v321 = vld [vmem:[%s262 + $0x20] sm:$0xff]
        %v322 = vld [vmem:[%s262 + $0x28] sm:$0xff]
        %v323 = vld [vmem:[%s262 + $0x30] sm:$0xff]
        %v324 = vld [vmem:[%s262 + $0x38] sm:$0xff]
        %v325 = vld [vmem:[%s309] sm:$0xff]
        %v326 = vld [vmem:[%s309 + $0x8] sm:$0xff]
        %v327 = vld [vmem:[%s309 + $0x10] sm:$0xff]
        %v328 = vld [vmem:[%s309 + $0x18] sm:$0xff]
        %v329 = vld [vmem:[%s309 + $0x20] sm:$0xff]
        %v330 = vld [vmem:[%s309 + $0x28] sm:$0xff]
        %v331 = vld [vmem:[%s309 + $0x30] sm:$0xff]
        %v332 = vld [vmem:[%s309 + $0x38] sm:$0xff]
        %v333 = vld [vmem:[%s309 + $0x40] sm:$0xff]
        %v334 = vld [vmem:[%s309 + $0x48] sm:$0xff]
        %v335 = vld [vmem:[%s309 + $0x50] sm:$0xff]
        %v336 = vld [vmem:[%s309 + $0x58] sm:$0xff]
        %v337 = vld [vmem:[%s309 + $0x60] sm:$0xff]
        %v338 = vld [vmem:[%s309 + $0x68] sm:$0xff]
        %v339 = vld [vmem:[%s309 + $0x70] sm:$0xff]
        %v340 = vld [vmem:[%s309 + $0x78] sm:$0xff]
        %v341 = vld [vmem:[%s314] sm:$0xff]
        %v342 = vld [vmem:[%s314 + $0x8] sm:$0xff]
        %v343 = vld [vmem:[%s314 + $0x10] sm:$0xff]
        %v344 = vld [vmem:[%s314 + $0x18] sm:$0xff]
        %v345 = vld [vmem:[%s314 + $0x20] sm:$0xff]
        %v346 = vld [vmem:[%s314 + $0x28] sm:$0xff]
        %v347 = vld [vmem:[%s314 + $0x30] sm:$0xff]
        %v348 = vld [vmem:[%s314 + $0x38] sm:$0xff]
        %v349 = vld [vmem:[%s314 + $0x40] sm:$0xff]
        %v350 = vld [vmem:[%s314 + $0x48] sm:$0xff]
        %v351 = vld [vmem:[%s314 + $0x50] sm:$0xff]
        %v352 = vld [vmem:[%s314 + $0x58] sm:$0xff]
        %v353 = vld [vmem:[%s314 + $0x60] sm:$0xff]
        %v354 = vld [vmem:[%s314 + $0x68] sm:$0xff]
        %v355 = vld [vmem:[%s314 + $0x70] sm:$0xff]
        %v356 = vld [vmem:[%s314 + $0x78] sm:$0xff]
        %v357 = vld [vmem:[%s2] sm:$0x3]
        %v359 = vlaneseq
        %v360 = vshrl.u32 %v359, 7
        %v361 = vsub.s32 0, %v360
        %v362 = vrot.slane %v357, %v361
        %v363 = vlaneseq
        %v364 = vshrl.u32 %v363, 7
        %v365 = vsub.s32 1, %v364
        %v366 = vrot.slane %v357, %v365
        %vm369 = vcmask 523264
        %v371 = vsel %vm369, %v317, 0
        %v374 = vsel %vm369, %v318, 0
        %v377 = vsel %vm369, %v319, 0
        %v380 = vsel %vm369, %v320, 0
        %v383 = vsel %vm369, %v321, 0
        %v386 = vsel %vm369, %v322, 0
        %v389 = vsel %vm369, %v323, 0
        %v392 = vsel %vm369, %v324, 0
        %394 = vmatprep.subr.mxu0 0.0
        %395 = vmatpush1.msra.mxu0 0.0
        %396 = vmatprep.subr.mxu0 0.0
        %397 = vmatpush1.msra.mxu0 0.0
        %398 = vmatprep.subr.mxu0 0.0
        %399 = vmatpush1.msra.mxu0 0.0
        %400 = vmatprep.subr.mxu0 0.0
        %401 = vmatpush1.msra.mxu0 0.0
        %402 = vmatprep.subr.mxu0 0.0
        %403 = vmatpush1.msra.mxu0 0.0
        %404 = vmatprep.subr.mxu0 0.0
        %405 = vmatpush1.msra.mxu0 0.0
        %406 = vmatprep.subr.mxu0 0.0
        %407 = vmatpush1.msra.mxu0 0.0
        %408 = vmatprep.subr.mxu0 0.0
        %409 = vmatpush1.msra.mxu0 0.0
        %410 = vmatprep.subr.mxu0 %v340
        %411 = vmatpush1.msra.mxu0 %v339
        %412 = vmatprep.subr.mxu0 %v338
        %413 = vmatpush1.msra.mxu0 %v337
        %414 = vmatprep.subr.mxu0 %v336
        %415 = vmatpush1.msra.mxu0 %v335
        %416 = vmatprep.subr.mxu0 %v334
        %417 = vmatpush1.msra.mxu0 %v333
        %418 = vmatprep.subr.mxu0 %v332
        %419 = vmatpush1.msra.mxu0 %v331
        %420 = vmatprep.subr.mxu0 %v330
        %421 = vmatpush1.msra.mxu0 %v329
        %422 = vmatprep.subr.mxu0 %v328
        %423 = vmatpush1.msra.mxu0 %v327
        %424 = vmatprep.subr.mxu0 %v326
        %425 = vmatpush1.msra.mxu0 %v325
        %426 = vmatprep.subr.mxu0 0.0
        %427 = vmatpush2.msra.mxu0 0.0
        %428 = vmatprep.subr.mxu0 0.0
        %429 = vmatpush2.msra.mxu0 0.0
        %430 = vmatprep.subr.mxu0 0.0
        %431 = vmatpush2.msra.mxu0 0.0
        %432 = vmatprep.subr.mxu0 0.0
        %433 = vmatpush2.msra.mxu0 0.0
        %434 = vmatprep.subr.mxu0 0.0
        %435 = vmatpush2.msra.mxu0 0.0
        %436 = vmatprep.subr.mxu0 0.0
        %437 = vmatpush2.msra.mxu0 0.0
        %438 = vmatprep.subr.mxu0 0.0
        %439 = vmatpush2.msra.mxu0 0.0
        %440 = vmatprep.subr.mxu0 0.0
        %441 = vmatpush2.msra.mxu0 0.0
        %442 = vmatprep.subr.mxu0 0.0
        %443 = vmatpush2.msra.mxu0 0.0
        %444 = vmatprep.subr.mxu0 0.0
        %445 = vmatpush2.msra.mxu0 0.0
        %446 = vmatprep.subr.mxu0 0.0
        %447 = vmatpush2.msra.mxu0 0.0
        %448 = vmatprep.subr.mxu0 0.0
        %449 = vmatpush2.msra.mxu0 0.0
        %450 = vmatprep.subr.mxu0 0.0
        %451 = vmatpush2.msra.mxu0 0.0
        %452 = vmatprep.subr.mxu0 0.0
        %453 = vmatpush2.msra.mxu0 0.0
        %454 = vmatprep.subr.mxu0 0.0
        %455 = vmatpush2.msra.mxu0 0.0
        %456 = vmatprep.subr.mxu0 0.0
        %457 = vmatpush2.msra.mxu0 0.0
        %458 = vmatprep.mubr.f32.mxu0 0.0
        %459 = vmatmul.mubr.f32.gmra.mxu0 %v371
        %v460 = vpop.f32.mrf.mxu0
        %v461 = vadd.f32 %v362, %v460
        %v462 = vpop.f32.mrf.mxu0
        %v463 = vadd.f32 %v366, %v462
        %464 = vmatprep.mubr.f32.mxu0 0.0
        %465 = vmatmul.mubr.f32.gmra.mxu0 %v374
        %v466 = vpop.f32.mrf.mxu0
        %v467 = vadd.f32 %v362, %v466
        %v468 = vpop.f32.mrf.mxu0
        %v469 = vadd.f32 %v366, %v468
        %470 = vmatprep.mubr.f32.mxu0 0.0
        %471 = vmatmul.mubr.f32.gmra.mxu0 %v377
        %v472 = vpop.f32.mrf.mxu0
        %v473 = vadd.f32 %v362, %v472
        %v474 = vpop.f32.mrf.mxu0
        %v475 = vadd.f32 %v366, %v474
        %476 = vmatprep.mubr.f32.mxu0 0.0
        %477 = vmatmul.mubr.f32.gmra.mxu0 %v380
        %v478 = vpop.f32.mrf.mxu0
        %v479 = vadd.f32 %v362, %v478
        %v480 = vpop.f32.mrf.mxu0
        %v481 = vadd.f32 %v366, %v480
        %482 = vmatprep.mubr.f32.mxu0 0.0
        %483 = vmatmul.mubr.f32.gmra.mxu0 %v383
        %v484 = vpop.f32.mrf.mxu0
        %v485 = vadd.f32 %v362, %v484
        %v486 = vpop.f32.mrf.mxu0
        %v487 = vadd.f32 %v366, %v486
        %488 = vmatprep.mubr.f32.mxu0 0.0
        %489 = vmatmul.mubr.f32.gmra.mxu0 %v386
        %v490 = vpop.f32.mrf.mxu0
        %v491 = vadd.f32 %v362, %v490
        %v492 = vpop.f32.mrf.mxu0
        %v493 = vadd.f32 %v366, %v492
        %494 = vmatprep.mubr.f32.mxu0 0.0
        %495 = vmatmul.mubr.f32.gmra.mxu0 %v389
        %v496 = vpop.f32.mrf.mxu0
        %v497 = vadd.f32 %v362, %v496
        %v498 = vpop.f32.mrf.mxu0
        %v499 = vadd.f32 %v366, %v498
        %500 = vmatprep.mubr.f32.mxu0 0.0
        %501 = vmatmul.mubr.f32.gmra.mxu0 %v392
        %v502 = vpop.f32.mrf.mxu0
        %v503 = vadd.f32 %v362, %v502
        %v504 = vpop.f32.mrf.mxu0
        %v505 = vadd.f32 %v366, %v504
        %506 = vdwg.mxu0
        %507 = vmax.xlane.f32.xlu0 %v461
        %v508 = vpop.xlane.xlu0 %507
        %509 = vmax.xlane.f32.xlu0 %v467
        %v510 = vpop.xlane.xlu0 %509
        %511 = vmax.xlane.f32.xlu0 %v473
        %v512 = vpop.xlane.xlu0 %511
        %513 = vmax.xlane.f32.xlu0 %v479
        %v514 = vpop.xlane.xlu0 %513
        %515 = vmax.xlane.f32.xlu0 %v485
        %v516 = vpop.xlane.xlu0 %515
        %517 = vmax.xlane.f32.xlu0 %v491
        %v518 = vpop.xlane.xlu0 %517
        %519 = vmax.xlane.f32.xlu0 %v497
        %v520 = vpop.xlane.xlu0 %519
        %521 = vmax.xlane.f32.xlu0 %v503
        %v522 = vpop.xlane.xlu0 %521
        %v523 = vsub.f32 %v461, %v508
        %v524 = vsub.f32 %v467, %v510
        %v525 = vsub.f32 %v473, %v512
        %v526 = vsub.f32 %v479, %v514
        %v527 = vsub.f32 %v485, %v516
        %v528 = vsub.f32 %v491, %v518
        %v529 = vsub.f32 %v497, %v520
        %v530 = vsub.f32 %v503, %v522
        %v531 = vmul.f32 %v523, 1.442695
        %v532 = vpow.pop %v531
        %v533 = vmul.f32 %v524, 1.442695
        %v534 = vpow.pop %v533
        %v535 = vmul.f32 %v525, 1.442695
        %v536 = vpow.pop %v535
        %v537 = vmul.f32 %v526, 1.442695
        %v538 = vpow.pop %v537
        %v539 = vmul.f32 %v527, 1.442695
        %v540 = vpow.pop %v539
        %v541 = vmul.f32 %v528, 1.442695
        %v542 = vpow.pop %v541
        %v543 = vmul.f32 %v529, 1.442695
        %v544 = vpow.pop %v543
        %v545 = vmul.f32 %v530, 1.442695
        %v546 = vpow.pop %v545
        %547 = vadd.xlane.f32.xlu0 %v532
        %v548 = vpop.xlane.xlu0 %547
        %549 = vadd.xlane.f32.xlu0 %v534
        %v550 = vpop.xlane.xlu0 %549
        %551 = vadd.xlane.f32.xlu0 %v536
        %v552 = vpop.xlane.xlu0 %551
        %553 = vadd.xlane.f32.xlu0 %v538
        %v554 = vpop.xlane.xlu0 %553
        %555 = vadd.xlane.f32.xlu0 %v540
        %v556 = vpop.xlane.xlu0 %555
        %557 = vadd.xlane.f32.xlu0 %v542
        %v558 = vpop.xlane.xlu0 %557
        %559 = vadd.xlane.f32.xlu0 %v544
        %v560 = vpop.xlane.xlu0 %559
        %561 = vadd.xlane.f32.xlu0 %v546
        %v562 = vpop.xlane.xlu0 %561
        %v563 = vrcp.pop %v548
        %v564 = vmul.f32 1.0, %v563
        %v565 = vrcp.pop %v550
        %v566 = vmul.f32 1.0, %v565
        %v567 = vrcp.pop %v552
        %v568 = vmul.f32 1.0, %v567
        %v569 = vrcp.pop %v554
        %v570 = vmul.f32 1.0, %v569
        %v571 = vrcp.pop %v556
        %v572 = vmul.f32 1.0, %v571
        %v573 = vrcp.pop %v558
        %v574 = vmul.f32 1.0, %v573
        %v575 = vrcp.pop %v560
        %v576 = vmul.f32 1.0, %v575
        %v577 = vrcp.pop %v562
        %v578 = vmul.f32 1.0, %v577
        %v579 = vmul.f32 %v532, %v564
        %v580 = vmul.f32 %v534, %v566
        %v581 = vmul.f32 %v536, %v568
        %v582 = vmul.f32 %v538, %v570
        %v583 = vmul.f32 %v540, %v572
        %v584 = vmul.f32 %v542, %v574
        %v585 = vmul.f32 %v544, %v576
        %v586 = vmul.f32 %v546, %v578
        %587 = vmatprep.subr.mxu0 0.0
        %588 = vmatpush1.msra.mxu0 %v356
        %589 = vmatprep.subr.mxu0 0.0
        %590 = vmatpush1.msra.mxu0 %v355
        %591 = vmatprep.subr.mxu0 0.0
        %592 = vmatpush1.msra.mxu0 %v354
        %593 = vmatprep.subr.mxu0 0.0
        %594 = vmatpush1.msra.mxu0 %v353
        %595 = vmatprep.subr.mxu0 0.0
        %596 = vmatpush1.msra.mxu0 %v352
        %597 = vmatprep.subr.mxu0 0.0
        %598 = vmatpush1.msra.mxu0 %v351
        %599 = vmatprep.subr.mxu0 0.0
        %600 = vmatpush1.msra.mxu0 %v350
        %601 = vmatprep.subr.mxu0 0.0
        %602 = vmatpush1.msra.mxu0 %v349
        %603 = vmatprep.subr.mxu0 0.0
        %604 = vmatpush1.msra.mxu0 %v348
        %605 = vmatprep.subr.mxu0 0.0
        %606 = vmatpush1.msra.mxu0 %v347
        %607 = vmatprep.subr.mxu0 0.0
        %608 = vmatpush1.msra.mxu0 %v346
        %609 = vmatprep.subr.mxu0 0.0
        %610 = vmatpush1.msra.mxu0 %v345
        %611 = vmatprep.subr.mxu0 0.0
        %612 = vmatpush1.msra.mxu0 %v344
        %613 = vmatprep.subr.mxu0 0.0
        %614 = vmatpush1.msra.mxu0 %v343
        %615 = vmatprep.subr.mxu0 0.0
        %616 = vmatpush1.msra.mxu0 %v342
        %617 = vmatprep.subr.mxu0 0.0
        %618 = vmatpush1.msra.mxu0 %v341
        %619 = vmatprep.subr.mxu0 0.0
        %620 = vmatpush2.msra.mxu0 0.0
        %621 = vmatprep.subr.mxu0 0.0
        %622 = vmatpush2.msra.mxu0 0.0
        %623 = vmatprep.subr.mxu0 0.0
        %624 = vmatpush2.msra.mxu0 0.0
        %625 = vmatprep.subr.mxu0 0.0
        %626 = vmatpush2.msra.mxu0 0.0
        %627 = vmatprep.subr.mxu0 0.0
        %628 = vmatpush2.msra.mxu0 0.0
        %629 = vmatprep.subr.mxu0 0.0
        %630 = vmatpush2.msra.mxu0 0.0
        %631 = vmatprep.subr.mxu0 0.0
        %632 = vmatpush2.msra.mxu0 0.0
        %633 = vmatprep.subr.mxu0 0.0
        %634 = vmatpush2.msra.mxu0 0.0
        %635 = vmatprep.subr.mxu0 0.0
        %636 = vmatpush2.msra.mxu0 0.0
        %637 = vmatprep.subr.mxu0 0.0
        %638 = vmatpush2.msra.mxu0 0.0
        %639 = vmatprep.subr.mxu0 0.0
        %640 = vmatpush2.msra.mxu0 0.0
        %641 = vmatprep.subr.mxu0 0.0
        %642 = vmatpush2.msra.mxu0 0.0
        %643 = vmatprep.subr.mxu0 0.0
        %644 = vmatpush2.msra.mxu0 0.0
        %645 = vmatprep.subr.mxu0 0.0
        %646 = vmatpush2.msra.mxu0 0.0
        %647 = vmatprep.subr.mxu0 0.0
        %648 = vmatpush2.msra.mxu0 0.0
        %649 = vmatprep.subr.mxu0 0.0
        %650 = vmatpush2.msra.mxu0 0.0
        %651 = vmatprep.mubr.f32.mxu0 0.0
        %652 = vmatmul.mubr.f32.gmra.mxu0 %v579
        %v653 = vpop.f32.mrf.mxu0
        %v654 = vadd.f32 0.0, %v653
        %v655 = vpop.f32.mrf.mxu0
        %656 = vmatprep.mubr.f32.mxu0 0.0
        %657 = vmatmul.mubr.f32.gmra.mxu0 %v580
        %v658 = vpop.f32.mrf.mxu0
        %v659 = vadd.f32 0.0, %v658
        %v660 = vpop.f32.mrf.mxu0
        %661 = vmatprep.mubr.f32.mxu0 0.0
        %662 = vmatmul.mubr.f32.gmra.mxu0 %v581
        %v663 = vpop.f32.mrf.mxu0
        %v664 = vadd.f32 0.0, %v663
        %v665 = vpop.f32.mrf.mxu0
        %666 = vmatprep.mubr.f32.mxu0 0.0
        %667 = vmatmul.mubr.f32.gmra.mxu0 %v582
        %v668 = vpop.f32.mrf.mxu0
        %v669 = vadd.f32 0.0, %v668
        %v670 = vpop.f32.mrf.mxu0
        %671 = vmatprep.mubr.f32.mxu0 0.0
        %672 = vmatmul.mubr.f32.gmra.mxu0 %v583
        %v673 = vpop.f32.mrf.mxu0
        %v674 = vadd.f32 0.0, %v673
        %v675 = vpop.f32.mrf.mxu0
        %676 = vmatprep.mubr.f32.mxu0 0.0
        %677 = vmatmul.mubr.f32.gmra.mxu0 %v584
        %v678 = vpop.f32.mrf.mxu0
        %v679 = vadd.f32 0.0, %v678
        %v680 = vpop.f32.mrf.mxu0
        %681 = vmatprep.mubr.f32.mxu0 0.0
        %682 = vmatmul.mubr.f32.gmra.mxu0 %v585
        %v683 = vpop.f32.mrf.mxu0
        %v684 = vadd.f32 0.0, %v683
        %v685 = vpop.f32.mrf.mxu0
        %686 = vmatprep.mubr.f32.mxu0 0.0
        %687 = vmatmul.mubr.f32.gmra.mxu0 %v586
        %v688 = vpop.f32.mrf.mxu0
        %v689 = vadd.f32 0.0, %v688
        %v690 = vpop.f32.mrf.mxu0
        %691 = vdwg.mxu0
        %692 = vmax.xlane.f32.xlu0 %v463
        %v693 = vpop.xlane.xlu0 %692
        %694 = vmax.xlane.f32.xlu0 %v469
        %v695 = vpop.xlane.xlu0 %694
        %696 = vmax.xlane.f32.xlu0 %v475
        %v697 = vpop.xlane.xlu0 %696
        %698 = vmax.xlane.f32.xlu0 %v481
        %v699 = vpop.xlane.xlu0 %698
        %700 = vmax.xlane.f32.xlu0 %v487
        %v701 = vpop.xlane.xlu0 %700
        %702 = vmax.xlane.f32.xlu0 %v493
        %v703 = vpop.xlane.xlu0 %702
        %704 = vmax.xlane.f32.xlu0 %v499
        %v705 = vpop.xlane.xlu0 %704
        %706 = vmax.xlane.f32.xlu0 %v505
        %v707 = vpop.xlane.xlu0 %706
        %v708 = vsub.f32 %v463, %v693
        %v709 = vsub.f32 %v469, %v695
        %v710 = vsub.f32 %v475, %v697
        %v711 = vsub.f32 %v481, %v699
        %v712 = vsub.f32 %v487, %v701
        %v713 = vsub.f32 %v493, %v703
        %v714 = vsub.f32 %v499, %v705
        %v715 = vsub.f32 %v505, %v707
        %v716 = vmul.f32 %v708, 1.442695
        %v717 = vpow.pop %v716
        %v718 = vmul.f32 %v709, 1.442695
        %v719 = vpow.pop %v718
        %v720 = vmul.f32 %v710, 1.442695
        %v721 = vpow.pop %v720
        %v722 = vmul.f32 %v711, 1.442695
        %v723 = vpow.pop %v722
        %v724 = vmul.f32 %v712, 1.442695
        %v725 = vpow.pop %v724
        %v726 = vmul.f32 %v713, 1.442695
        %v727 = vpow.pop %v726
        %v728 = vmul.f32 %v714, 1.442695
        %v729 = vpow.pop %v728
        %v730 = vmul.f32 %v715, 1.442695
        %v731 = vpow.pop %v730
        %732 = vadd.xlane.f32.xlu0 %v717
        %v733 = vpop.xlane.xlu0 %732
        %734 = vadd.xlane.f32.xlu0 %v719
        %v735 = vpop.xlane.xlu0 %734
        %736 = vadd.xlane.f32.xlu0 %v721
        %v737 = vpop.xlane.xlu0 %736
        %738 = vadd.xlane.f32.xlu0 %v723
        %v739 = vpop.xlane.xlu0 %738
        %740 = vadd.xlane.f32.xlu0 %v725
        %v741 = vpop.xlane.xlu0 %740
        %742 = vadd.xlane.f32.xlu0 %v727
        %v743 = vpop.xlane.xlu0 %742
        %744 = vadd.xlane.f32.xlu0 %v729
        %v745 = vpop.xlane.xlu0 %744
        %746 = vadd.xlane.f32.xlu0 %v731
        %v747 = vpop.xlane.xlu0 %746
        %v748 = vrcp.pop %v733
        %v749 = vmul.f32 1.0, %v748
        %v750 = vrcp.pop %v735
        %v751 = vmul.f32 1.0, %v750
        %v752 = vrcp.pop %v737
        %v753 = vmul.f32 1.0, %v752
        %v754 = vrcp.pop %v739
        %v755 = vmul.f32 1.0, %v754
        %v756 = vrcp.pop %v741
        %v757 = vmul.f32 1.0, %v756
        %v758 = vrcp.pop %v743
        %v759 = vmul.f32 1.0, %v758
        %v760 = vrcp.pop %v745
        %v761 = vmul.f32 1.0, %v760
        %v762 = vrcp.pop %v747
        %v763 = vmul.f32 1.0, %v762
        %v764 = vmul.f32 %v717, %v749
        %v765 = vmul.f32 %v719, %v751
        %v766 = vmul.f32 %v721, %v753
        %v767 = vmul.f32 %v723, %v755
        %v768 = vmul.f32 %v725, %v757
        %v769 = vmul.f32 %v727, %v759
        %v770 = vmul.f32 %v729, %v761
        %v771 = vmul.f32 %v731, %v763
        %772 = vmatprep.subr.mxu0 0.0
        %773 = vmatpush1.msra.mxu0 %v356
        %774 = vmatprep.subr.mxu0 0.0
        %775 = vmatpush1.msra.mxu0 %v355
        %776 = vmatprep.subr.mxu0 0.0
        %777 = vmatpush1.msra.mxu0 %v354
        %778 = vmatprep.subr.mxu0 0.0
        %779 = vmatpush1.msra.mxu0 %v353
        %780 = vmatprep.subr.mxu0 0.0
        %781 = vmatpush1.msra.mxu0 %v352
        %782 = vmatprep.subr.mxu0 0.0
        %783 = vmatpush1.msra.mxu0 %v351
        %784 = vmatprep.subr.mxu0 0.0
        %785 = vmatpush1.msra.mxu0 %v350
        %786 = vmatprep.subr.mxu0 0.0
        %787 = vmatpush1.msra.mxu0 %v349
        %788 = vmatprep.subr.mxu0 0.0
        %789 = vmatpush1.msra.mxu0 %v348
        %790 = vmatprep.subr.mxu0 0.0
        %791 = vmatpush1.msra.mxu0 %v347
        %792 = vmatprep.subr.mxu0 0.0
        %793 = vmatpush1.msra.mxu0 %v346
        %794 = vmatprep.subr.mxu0 0.0
        %795 = vmatpush1.msra.mxu0 %v345
        %796 = vmatprep.subr.mxu0 0.0
        %797 = vmatpush1.msra.mxu0 %v344
        %798 = vmatprep.subr.mxu0 0.0
        %799 = vmatpush1.msra.mxu0 %v343
        %800 = vmatprep.subr.mxu0 0.0
        %801 = vmatpush1.msra.mxu0 %v342
        %802 = vmatprep.subr.mxu0 0.0
        %803 = vmatpush1.msra.mxu0 %v341
        %804 = vmatprep.subr.mxu0 0.0
        %805 = vmatpush2.msra.mxu0 0.0
        %806 = vmatprep.subr.mxu0 0.0
        %807 = vmatpush2.msra.mxu0 0.0
        %808 = vmatprep.subr.mxu0 0.0
        %809 = vmatpush2.msra.mxu0 0.0
        %810 = vmatprep.subr.mxu0 0.0
        %811 = vmatpush2.msra.mxu0 0.0
        %812 = vmatprep.subr.mxu0 0.0
        %813 = vmatpush2.msra.mxu0 0.0
        %814 = vmatprep.subr.mxu0 0.0
        %815 = vmatpush2.msra.mxu0 0.0
        %816 = vmatprep.subr.mxu0 0.0
        %817 = vmatpush2.msra.mxu0 0.0
        %818 = vmatprep.subr.mxu0 0.0
        %819 = vmatpush2.msra.mxu0 0.0
        %820 = vmatprep.subr.mxu0 0.0
        %821 = vmatpush2.msra.mxu0 0.0
        %822 = vmatprep.subr.mxu0 0.0
        %823 = vmatpush2.msra.mxu0 0.0
        %824 = vmatprep.subr.mxu0 0.0
        %825 = vmatpush2.msra.mxu0 0.0
        %826 = vmatprep.subr.mxu0 0.0
        %827 = vmatpush2.msra.mxu0 0.0
        %828 = vmatprep.subr.mxu0 0.0
        %829 = vmatpush2.msra.mxu0 0.0
        %830 = vmatprep.subr.mxu0 0.0
        %831 = vmatpush2.msra.mxu0 0.0
        %832 = vmatprep.subr.mxu0 0.0
        %833 = vmatpush2.msra.mxu0 0.0
        %834 = vmatprep.subr.mxu0 0.0
        %835 = vmatpush2.msra.mxu0 0.0
        %836 = vmatprep.mubr.f32.mxu0 0.0
        %837 = vmatmul.mubr.f32.gmra.mxu0 %v764
        %v838 = vpop.f32.mrf.mxu0
        %v839 = vadd.f32 0.0, %v838
        %v840 = vpop.f32.mrf.mxu0
        %841 = vmatprep.mubr.f32.mxu0 0.0
        %842 = vmatmul.mubr.f32.gmra.mxu0 %v765
        %v843 = vpop.f32.mrf.mxu0
        %v844 = vadd.f32 0.0, %v843
        %v845 = vpop.f32.mrf.mxu0
        %846 = vmatprep.mubr.f32.mxu0 0.0
        %847 = vmatmul.mubr.f32.gmra.mxu0 %v766
        %v848 = vpop.f32.mrf.mxu0
        %v849 = vadd.f32 0.0, %v848
        %v850 = vpop.f32.mrf.mxu0
        %851 = vmatprep.mubr.f32.mxu0 0.0
        %852 = vmatmul.mubr.f32.gmra.mxu0 %v767
        %v853 = vpop.f32.mrf.mxu0
        %v854 = vadd.f32 0.0, %v853
        %v855 = vpop.f32.mrf.mxu0
        %856 = vmatprep.mubr.f32.mxu0 0.0
        %857 = vmatmul.mubr.f32.gmra.mxu0 %v768
        %v858 = vpop.f32.mrf.mxu0
        %v859 = vadd.f32 0.0, %v858
        %v860 = vpop.f32.mrf.mxu0
        %861 = vmatprep.mubr.f32.mxu0 0.0
        %862 = vmatmul.mubr.f32.gmra.mxu0 %v769
        %v863 = vpop.f32.mrf.mxu0
        %v864 = vadd.f32 0.0, %v863
        %v865 = vpop.f32.mrf.mxu0
        %866 = vmatprep.mubr.f32.mxu0 0.0
        %867 = vmatmul.mubr.f32.gmra.mxu0 %v770
        %v868 = vpop.f32.mrf.mxu0
        %v869 = vadd.f32 0.0, %v868
        %v870 = vpop.f32.mrf.mxu0
        %871 = vmatprep.mubr.f32.mxu0 0.0
        %872 = vmatmul.mubr.f32.gmra.mxu0 %v771
        %v873 = vpop.f32.mrf.mxu0
        %v874 = vadd.f32 0.0, %v873
        %v875 = vpop.f32.mrf.mxu0
        %876 = vdwg.mxu0
        %885 = vrot.lane.b32.xlu0 %v839, 32
        %v886 = vpop.permute.xlu0 %885
        %887 = vrot.lane.b32.xlu0 %v844, 32
        %v888 = vpop.permute.xlu0 %887
        %889 = vrot.lane.b32.xlu0 %v849, 32
        %v890 = vpop.permute.xlu0 %889
        %891 = vrot.lane.b32.xlu0 %v854, 32
        %v892 = vpop.permute.xlu0 %891
        %893 = vrot.lane.b32.xlu0 %v859, 32
        %v894 = vpop.permute.xlu0 %893
        %895 = vrot.lane.b32.xlu0 %v864, 32
        %v896 = vpop.permute.xlu0 %895
        %897 = vrot.lane.b32.xlu0 %v869, 32
        %v898 = vpop.permute.xlu0 %897
        %899 = vrot.lane.b32.xlu0 %v874, 32
        %v900 = vpop.permute.xlu0 %899
        %vm909 = vcmask 261120
        %v910 = vsel %vm909, %v654, %v886
        %v911 = vsel %vm909, %v659, %v888
        %v912 = vsel %vm909, %v664, %v890
        %v913 = vsel %vm909, %v669, %v892
        %v914 = vsel %vm909, %v674, %v894
        %v915 = vsel %vm909, %v679, %v896
        %v916 = vsel %vm909, %v684, %v898
        %v917 = vsel %vm909, %v689, %v900
        %918 = vst.msk [vmem:[%s296] sm:$0xff] %vm369, %v910
        %919 = vst.msk [vmem:[%s296 + $0x8] sm:$0xff] %vm369, %v911
        %920 = vst.msk [vmem:[%s296 + $0x10] sm:$0xff] %vm369, %v912
        %921 = vst.msk [vmem:[%s296 + $0x18] sm:$0xff] %vm369, %v913
        %922 = vst.msk [vmem:[%s296 + $0x20] sm:$0xff] %vm369, %v914
        %923 = vst.msk [vmem:[%s296 + $0x28] sm:$0xff] %vm369, %v915
        %924 = vst.msk [vmem:[%s296 + $0x30] sm:$0xff] %vm369, %v916
        %925 = vst.msk [vmem:[%s296 + $0x38] sm:$0xff] %vm369, %v917
        %926 = vst [vmem:[%s303] sm:$0xff] %v579
        %927 = vst [vmem:[%s303 + $0x8] sm:$0xff] %v764
        %928 = vst [vmem:[%s303 + $0x10] sm:$0xff] %v580
        %929 = vst [vmem:[%s303 + $0x18] sm:$0xff] %v765
        %930 = vst [vmem:[%s303 + $0x20] sm:$0xff] %v581
        %931 = vst [vmem:[%s303 + $0x28] sm:$0xff] %v766
        %932 = vst [vmem:[%s303 + $0x30] sm:$0xff] %v582
        %933 = vst [vmem:[%s303 + $0x38] sm:$0xff] %v767
        %934 = vst [vmem:[%s303 + $0x40] sm:$0xff] %v583
        %935 = vst [vmem:[%s303 + $0x48] sm:$0xff] %v768
        %936 = vst [vmem:[%s303 + $0x50] sm:$0xff] %v584
        %937 = vst [vmem:[%s303 + $0x58] sm:$0xff] %v769
        %938 = vst [vmem:[%s303 + $0x60] sm:$0xff] %v585
        %939 = vst [vmem:[%s303 + $0x68] sm:$0xff] %v770
        %940 = vst [vmem:[%s303 + $0x70] sm:$0xff] %v586
        %941 = vst [vmem:[%s303 + $0x78] sm:$0xff] %v771
        %s942 = sand.u32 %s149, 1
        %s943 = scalar_lea.sflag [#allocation4], %s942
        %s944 = sand.u32 %s149, 1
        %s945 = smul.addr %s944, 64
        %s946 = scalar_lea.vmem [#allocation5], %s945
        %s947 = sand.u32 %s177, 1
        %s948 = scalar_lea.sflag [#allocation7], %s947
        %s949 = sand.u32 %s177, 1
        %s950 = smul.addr %s949, 128
        %s951 = scalar_lea.vmem [#allocation6], %s950
        // Predicated region
        $region41: #{tpu_custom_call.1} parent=35 // pred_check
          %p952 = pneg %p159
        $region42: #{tpu_custom_call.1} parent=35 // pred_check_branch
          %954 = sbr.rel (%p952) target = $region44
        $region43: #{tpu_custom_call.1} parent=35 // pred_region
          %s955 = smul.u32 8, %s31
          %s957 = ssub.s32 1024, 1024
          %958 = vsyncadd %s943, %s957
          %s959 = smul.addr %s30, 8
          %s960 = sadd.s32 %s955, %s959
          %s961 = smul.addr %s960, 128
          %s962 = scalar_lea.hbm %s4, %s961
          %s963 = sshll.u32 %s946, 4
          %s964 = int_to_ptr.vmem [resolvable:$true] %s963
          %969 = dma.vmem_to_hbm [thread:$0]  %s964, 1024, %s962, %s943, 128, 128, 8
        $region44: #{tpu_custom_call.1} parent=35 // pred_fallthru
          _
        // Predicated region
        $region45: #{tpu_custom_call.1} parent=35 // pred_check
          %p970 = pneg %p187
        $region46: #{tpu_custom_call.1} parent=35 // pred_check_branch
          %972 = sbr.rel (%p970) target = $region48
        $region47: #{tpu_custom_call.1} parent=35 // pred_region
          %s973 = smul.u32 8, %s31
          %s975 = ssub.s32 2048, 2048
          %976 = vsyncadd %s948, %s975
          %s977 = smul.addr %s973, 2
          %s978 = smul.addr %s30, 16
          %s979 = sadd.s32 %s977, %s978
          %s980 = smul.addr %s979, 128
          %s981 = scalar_lea.hbm %s5, %s980
          %s982 = sshll.u32 %s951, 4
          %s983 = int_to_ptr.vmem [resolvable:$true] %s982
          %988 = dma.vmem_to_hbm [thread:$0]  %s983, 2048, %s981, %s948, 256, 256, 16
        $region48: #{tpu_custom_call.1} parent=35 // pred_fallthru
          _
      $region36: #{tpu_custom_call.1} parent=5 // pred_fallthru
        _
      %p989 = scmp.le.s32.totalorder 2, %s21
      // Predicated region
      $region49: #{tpu_custom_call.1} parent=5 // pred_check
        %p990 = pneg %p989
      $region50: #{tpu_custom_call.1} parent=5 // pred_check_branch
        %992 = sbr.rel (%p990) target = $region52
      $region51: #{tpu_custom_call.1} parent=5 // pred_region
        %s993 = ssub.s32 %s21, 2
        // Predicated region
        $region53: #{tpu_custom_call.1} parent=51 // pred_check
          %p994 = pneg %p165
        $region54: #{tpu_custom_call.1} parent=51 // pred_check_branch
          %996 = sbr.rel (%p994) target = $region56
        $region55: #{tpu_custom_call.1} parent=51 // pred_region
          %s997 = sand.u32 %s150, 1
          %s998 = scalar_lea.sflag [#allocation4], %s997
          %s999 = sand.u32 %s150, 1
          %s1000 = smul.addr %s999, 64
          %s1001 = scalar_lea.vmem [#allocation5], %s1000
          %1002 = dma.done %s998, 1024
        $region56: #{tpu_custom_call.1} parent=51 // pred_fallthru
          _
        // Predicated region
        $region57: #{tpu_custom_call.1} parent=51 // pred_check
          %p1003 = pneg %p193
        $region58: #{tpu_custom_call.1} parent=51 // pred_check_branch
          %1005 = sbr.rel (%p1003) target = $region60
        $region59: #{tpu_custom_call.1} parent=51 // pred_region
          %s1006 = sand.u32 %s178, 1
          %s1007 = scalar_lea.sflag [#allocation7], %s1006
          %s1008 = sand.u32 %s178, 1
          %s1009 = smul.addr %s1008, 128
          %s1010 = scalar_lea.vmem [#allocation6], %s1009
          %1011 = dma.done %s1007, 2048
        $region60: #{tpu_custom_call.1} parent=51 // pred_fallthru
          _
      $region52: #{tpu_custom_call.1} parent=5 // pred_fallthru
        _
    $region6: #{tpu_custom_call.1} parent=1 // loop_footer
      %s25 = sadd.s32 1, %s21
    $region7: #{tpu_custom_call.1} parent=1 // loop_footer_branch
      %20 = sbr.rel target = $region3
    $region8: #{tpu_custom_call.1} parent=1 // loop_exit
      _
    %1012 = vsyncpa [#allocation3], 1
    %s1013 = scalar_lea.sflag [#allocation3], 1
    %1014 = vsyncpa %s1013, 1
    %1015 = vsyncpa [#allocation4], 1
    %s1016 = scalar_lea.sflag [#allocation4], 1
    %1017 = vsyncpa %s1016, 1
    %1018 = vsyncpa [#allocation7], 1
    %s1019 = scalar_lea.sflag [#allocation7], 1
    %1020 = vsyncpa %s1019, 1

</llo_original>
